<compile_context>
chip_gen: v7x
topology: tpu7x:2x2x1
jax: 0.10.0
libtpu: 0.0.40
codegen_flags: <defaults>
</compile_context>

<pallas_src>
import functools

import jax
import jax.numpy as jnp
from jax.experimental import pallas as pl
from jax.experimental.pallas import tpu as pltpu


def _round_up(x, m):
    return (x + m - 1) // m * m


def _color_mlp_kernel(*refs, num_hidden, compute_dtype):
    """refs = (x_ref, w0, b0, ..., w_{H-1}, b_{H-1}, wlastT, blast, o_ref).

    Hidden layers run row-major (tile, feat); the final layer is computed
    transposed so the output tile is (8, tile) == lane-dense, full-sublane.
    """
    x_ref = refs[0]
    o_ref = refs[-1]
    params = refs[1:-1]
    assert len(params) == 2 * num_hidden + 2

    # Matmul operands in compute_dtype (bf16 on the fast path); accumulation,
    # bias-add and ReLU stay f32 (safe on v5e, accurate everywhere).  The
    # f32 -> bf16 cast of x happens HERE (in-kernel), not in the wrapper.
    h_c = x_ref[...].astype(compute_dtype)
    h32 = None
    for layer in range(num_hidden):
        w = params[2 * layer][...]          # (in_p, out_p), compute_dtype
        b = params[2 * layer + 1][...]      # (1, out_p), f32
        acc = jnp.dot(h_c, w, preferred_element_type=jnp.float32) + b
        h32 = jnp.maximum(acc, 0.0)         # f32 ReLU
        h_c = h32.astype(compute_dtype)

    w_last_t = params[2 * num_hidden][...]      # (8, W_pad), compute_dtype
    b_last = params[2 * num_hidden + 1][...]    # (8, 1), f32

    # Aligned f32 transpose (tile, W_pad) -> (W_pad, tile): XLU work (MXU is
    # idle there).  Kept f32 (then cast) for portable lowering; packed bf16
    # transpose support varies by TPU generation.
    h_t = jnp.transpose(h32).astype(compute_dtype)
    out_t = jnp.dot(w_last_t, h_t, preferred_element_type=jnp.float32) + b_last
    o_ref[...] = out_t.astype(o_ref.dtype)      # (8, tile) lane-dense store


def color_network_forward(x, weights, biases, *, tile_n=4096,
                          compute_dtype=jnp.bfloat16, output_layout="nc"):
    """Run the ColorNetwork MLP on x: [N, d_in] -> [N, 3] rgb logits.

    weights: list of [in_f, out_f] arrays (transposed vs. torch nn.Linear).
    biases : list of [out_f] arrays.
    tile_n : max row tile (multiple of 128).  Actual tile also adapts to N so
             each TensorCore sees several grid steps.
    compute_dtype : matmul operand dtype (bf16 fast path / f32 exact path);
             accumulation, bias and ReLU are always f32.
    output_layout : "nc" (default) returns [N, 3] per the module contract;
             "cn" returns the raw lane-dense [8, N] slab (rows 3..7 zero) for
             fusion into a downstream consumer (e.g. sigmoid) with no extra
             HBM transpose pass.
    """
    N, d_in = x.shape
    out_dtype = x.dtype
    L = len(weights)
    assert L >= 2, "rgbnet_depth must be >= 2"

    # ---- pad hidden widths to 128, output channels 3 -> 8 (zeros, exact) ----
    dims = [d_in] + [int(w.shape[1]) for w in weights]
    n_out = dims[-1]                         # 3
    n_out_pad = _round_up(max(n_out, 8), 8)  # 8: full-sublane store slab
    pdims = list(dims)
    for i in range(1, L):                    # hidden widths
        pdims[i] = _round_up(dims[i], 128)
    pdims[L] = n_out_pad

    padded_w, padded_b = [], []
    for li in range(L):
        w, b = weights[li], biases[li]
        in_p, out_p = pdims[li], pdims[li + 1]
        w = jnp.pad(w, ((0, in_p - w.shape[0]), (0, out_p - w.shape[1])))
        b = jnp.pad(b, ((0, out_p - b.shape[0]),))
        padded_w.append(w)
        padded_b.append(b)

    num_hidden = L - 1
    flat_params, param_specs = [], []
    for li in range(num_hidden):
        w = padded_w[li].astype(compute_dtype)
        b = padded_b[li].astype(jnp.float32).reshape(1, -1)
        flat_params += [w, b]
        param_specs += [pl.BlockSpec(w.shape, lambda i: (0, 0)),
                        pl.BlockSpec(b.shape, lambda i: (0, 0))]
    # Final layer kept transposed: (8, W_pad) weight, (8, 1) bias (rows 3..7 zero).
    w_last_t = jnp.transpose(padded_w[-1]).astype(compute_dtype)
    b_last = padded_b[-1].astype(jnp.float32).reshape(-1, 1)
    flat_params += [w_last_t, b_last]
    param_specs += [pl.BlockSpec(w_last_t.shape, lambda i: (0, 0)),
                    pl.BlockSpec(b_last.shape, lambda i: (0, 0))]

    # ---- row tiling: no padding of x; ragged tail handled by Pallas masking.
    # Tile adapts to N so each TC gets several steps (>= ~8 blocks total).
    tile = _round_up(min(tile_n, _round_up(pl.cdiv(N, 8), 128)), 128)
    grid = (pl.cdiv(N, tile),)

    x_spec = pl.BlockSpec((tile, d_in), lambda i: (i, 0))       # native dtype
    out_spec = pl.BlockSpec((n_out_pad, tile), lambda i: (0, i))  # lane-dense

    # ---- VMEM budget -> explicit scoped limit (capped at v7x physical) ----
    max_w = max(pdims)
    cdt_size = jnp.dtype(compute_dtype).itemsize
    vmem_est = (
        2 * tile * d_in * x.dtype.itemsize                       # x dbl buffer
        + 2 * n_out_pad * tile * jnp.dtype(out_dtype).itemsize   # out dbl buf
        + 2 * sum(int(p.size) * p.dtype.itemsize for p in flat_params)
        + (num_hidden + 2) * tile * max_w * 4                    # f32 temps
        + (num_hidden + 1) * tile * max_w * cdt_size)            # cdt copies
    vmem_limit = int(min(max(vmem_est * 3 // 2, 32 * 1024 * 1024),
                         64 * 1024 * 1024))

    flops = 2 * N * sum(pdims[i] * pdims[i + 1] for i in range(L))
    bytes_accessed = int(
        x.size * x.dtype.itemsize
        + N * n_out_pad * jnp.dtype(out_dtype).itemsize
        + sum(int(p.size) * p.dtype.itemsize for p in flat_params))
    cost = pl.CostEstimate(flops=int(flops), transcendentals=0,
                           bytes_accessed=bytes_accessed)

    kernel = functools.partial(_color_mlp_kernel, num_hidden=num_hidden,
                               compute_dtype=compute_dtype)

    out_t = pl.pallas_call(
        kernel,
        out_shape=jax.ShapeDtypeStruct((n_out_pad, N), out_dtype),
        grid_spec=pltpu.PrefetchScalarGridSpec(
            num_scalar_prefetch=0,
            grid=grid,
            in_specs=[x_spec] + param_specs,
            out_specs=out_spec,
        ),
        compiler_params=pltpu.CompilerParams(
            dimension_semantics=("parallel",),
            vmem_limit_bytes=vmem_limit),
        cost_estimate=cost,
    )(x, *flat_params)

    if output_layout == "cn":
        return out_t                       # (8, N), rows 3..7 are zeros
    # Tiny layout-plumbing slice+transpose back to the module's [N, 3] contract
    # (skip it by requesting output_layout="cn" and fusing downstream).
    return out_t[:n_out].T


def init_color_network_params(key, d_in, rgbnet_width, rgbnet_depth):
    """Deterministic init mimicking torch nn.Linear defaults:
    U(-1/sqrt(fan_in), 1/sqrt(fan_in)) for weight & bias; last bias = 0."""
    dims = [d_in] + [rgbnet_width] * (rgbnet_depth - 1) + [3]
    weights, biases = [], []
    for li in range(len(dims) - 1):
        fan_in, fan_out = dims[li], dims[li + 1]
        key, kw, kb = jax.random.split(key, 3)
        bound = 1.0 / jnp.sqrt(jnp.float32(fan_in))
        w = jax.random.uniform(kw, (fan_in, fan_out), jnp.float32,
                               minval=-bound, maxval=bound)
        b = jax.random.uniform(kb, (fan_out,), jnp.float32,
                               minval=-bound, maxval=bound)
        if li == len(dims) - 2:
            b = jnp.zeros((fan_out,), jnp.float32)  # nn.init.constant_(bias, 0)
        weights.append(w)
        biases.append(b)
    return weights, biases


def reference_forward(x, weights, biases):
    h = x
    for li, (w, b) in enumerate(zip(weights, biases)):
        h = h @ w + b
        if li < len(weights) - 1:
            h = jnp.maximum(h, 0.0)
    return h


if __name__ == "__main__":
    d_in = 32
    rgbnet_width = 64
    rgbnet_depth = 3
    N = 2048  # -> tile 256, 8 grid steps (several per TensorCore on v7x)

    key = jax.random.PRNGKey(0)
    key, kx = jax.random.split(key)
    x = jax.random.normal(kx, (N, d_in), jnp.float32)
    weights, biases = init_color_network_params(key, d_in, rgbnet_width,
                                                rgbnet_depth)
    ref = reference_forward(x, weights, biases)

    # Exact f32 compute path.
    out_f32 = color_network_forward(x, weights, biases,
                                    compute_dtype=jnp.float32)
    out_f32 = jax.block_until_ready(out_f32)
    assert out_f32.shape == (N, 3)
    assert jnp.allclose(out_f32, ref, atol=2e-4, rtol=2e-4), "f32 mismatch"

    # Fast bf16-operand path (f32 accumulation) -> looser tolerance.
    out_bf16 = color_network_forward(x, weights, biases)  # defaults
    out_bf16 = jax.block_until_ready(out_bf16)
    assert out_bf16.shape == (N, 3)
    assert jnp.allclose(out_bf16, ref, atol=5e-2, rtol=5e-2), "bf16 mismatch"

    # Ragged N (exercises the unpadded cdiv grid + masked last block).
    out_small = color_network_forward(x[:300], weights, biases,
                                      compute_dtype=jnp.float32)
    out_small = jax.block_until_ready(out_small)
    assert out_small.shape == (300, 3)
    assert jnp.allclose(out_small, ref[:300], atol=2e-4, rtol=2e-4), \
        "ragged-N mismatch"

    # Lane-dense "cn" layout (no transpose-back; for fused consumers).
    out_cn = color_network_forward(x, weights, biases,
                                   compute_dtype=jnp.float32,
                                   output_layout="cn")
    out_cn = jax.block_until_ready(out_cn)
    assert out_cn.shape == (8, N)
    assert jnp.allclose(out_cn[:3].T, ref, atol=2e-4, rtol=2e-4), \
        "cn-layout mismatch"
    assert jnp.allclose(out_cn[3:], 0.0), "pad rows not zero"

    print("KERNEL_OK")
</pallas_src>

<mosaic_0001>
module attributes {stable_mosaic.version = 11 : i64} {
  func.func @_color_mlp_kernel(%arg0: i32, %arg1: memref<256x32xf32, #tpu.memory_space<vmem>>, %arg2: memref<32x128xf32, #tpu.memory_space<vmem>>, %arg3: memref<1x128xf32, #tpu.memory_space<vmem>>, %arg4: memref<128x128xf32, #tpu.memory_space<vmem>>, %arg5: memref<1x128xf32, #tpu.memory_space<vmem>>, %arg6: memref<8x128xf32, #tpu.memory_space<vmem>>, %arg7: memref<8x1xf32, #tpu.memory_space<vmem>>, %arg8: memref<8x256xf32, #tpu.memory_space<vmem>>) attributes {dimension_semantics = [#tpu.dimension_semantics<parallel>], iteration_bounds = array<i64: 8>, scalar_prefetch = 0 : i64, scratch_operands = 0 : i64, tpu.core_type = #tpu.core_type<tc>, window_params = [{transform_indices = @transform_0, window_bounds = array<i64: 256, 32>}, {pipeline_mode = #tpu.pipeline_mode<synchronous>, transform_indices = @transform_1, window_bounds = array<i64: 32, 128>}, {pipeline_mode = #tpu.pipeline_mode<synchronous>, transform_indices = @transform_2, window_bounds = array<i64: 1, 128>}, {pipeline_mode = #tpu.pipeline_mode<synchronous>, transform_indices = @transform_3, window_bounds = array<i64: 128, 128>}, {pipeline_mode = #tpu.pipeline_mode<synchronous>, transform_indices = @transform_4, window_bounds = array<i64: 1, 128>}, {pipeline_mode = #tpu.pipeline_mode<synchronous>, transform_indices = @transform_5, window_bounds = array<i64: 8, 128>}, {pipeline_mode = #tpu.pipeline_mode<synchronous>, transform_indices = @transform_6, window_bounds = array<i64: 8, 1>}, {transform_indices = @transform_7, window_bounds = array<i64: 8, 256>}]} {
    %c0 = arith.constant 0 : index
    %c0_0 = arith.constant 0 : index
    %0 = vector.load %arg1[%c0, %c0_0] : memref<256x32xf32, #tpu.memory_space<vmem>>, vector<256x32xf32>
    %c0_1 = arith.constant 0 : index
    %c0_2 = arith.constant 0 : index
    %1 = vector.load %arg2[%c0_1, %c0_2] : memref<32x128xf32, #tpu.memory_space<vmem>>, vector<32x128xf32>
    %c0_3 = arith.constant 0 : index
    %c0_4 = arith.constant 0 : index
    %2 = vector.load %arg3[%c0_3, %c0_4] : memref<1x128xf32, #tpu.memory_space<vmem>>, vector<1x128xf32>
    %cst = arith.constant dense<0.000000e+00> : vector<256x128xf32>
    %3 = tpu.matmul %0, %1, %cst {dimension_numbers = #tpu.dot_dimension_numbers<[1], [0], [0], [1], [0, 0, 1, 1], [], []>} : vector<256x32xf32>, vector<32x128xf32>, vector<256x128xf32> -> vector<256x128xf32>
    %4 = vector.broadcast %2 : vector<1x128xf32> to vector<256x128xf32>
    %5 = arith.addf %3, %4 : vector<256x128xf32>
    %cst_5 = arith.constant 0.000000e+00 : f32
    %6 = vector.broadcast %cst_5 : f32 to vector<256x128xf32>
    %7 = arith.maximumf %5, %6 : vector<256x128xf32>
    %c0_6 = arith.constant 0 : index
    %c0_7 = arith.constant 0 : index
    %8 = vector.load %arg4[%c0_6, %c0_7] : memref<128x128xf32, #tpu.memory_space<vmem>>, vector<128x128xf32>
    %c0_8 = arith.constant 0 : index
    %c0_9 = arith.constant 0 : index
    %9 = vector.load %arg5[%c0_8, %c0_9] : memref<1x128xf32, #tpu.memory_space<vmem>>, vector<1x128xf32>
    %cst_10 = arith.constant dense<0.000000e+00> : vector<256x128xf32>
    %10 = tpu.matmul %7, %8, %cst_10 {dimension_numbers = #tpu.dot_dimension_numbers<[1], [0], [0], [1], [0, 0, 1, 1], [], []>} : vector<256x128xf32>, vector<128x128xf32>, vector<256x128xf32> -> vector<256x128xf32>
    %11 = vector.broadcast %9 : vector<1x128xf32> to vector<256x128xf32>
    %12 = arith.addf %10, %11 : vector<256x128xf32>
    %cst_11 = arith.constant 0.000000e+00 : f32
    %13 = vector.broadcast %cst_11 : f32 to vector<256x128xf32>
    %14 = arith.maximumf %12, %13 : vector<256x128xf32>
    %c0_12 = arith.constant 0 : index
    %c0_13 = arith.constant 0 : index
    %15 = vector.load %arg6[%c0_12, %c0_13] : memref<8x128xf32, #tpu.memory_space<vmem>>, vector<8x128xf32>
    %c0_14 = arith.constant 0 : index
    %c0_15 = arith.constant 0 : index
    %16 = vector.load %arg7[%c0_14, %c0_15] : memref<8x1xf32, #tpu.memory_space<vmem>>, vector<8x1xf32>
    %17 = tpu.transpose %14, [1, 0] : vector<256x128xf32> -> vector<128x256xf32>
    %cst_16 = arith.constant dense<0.000000e+00> : vector<8x256xf32>
    %18 = tpu.matmul %15, %17, %cst_16 {dimension_numbers = #tpu.dot_dimension_numbers<[1], [0], [0], [1], [0, 0, 1, 1], [], []>} : vector<8x128xf32>, vector<128x256xf32>, vector<8x256xf32> -> vector<8x256xf32>
    %19 = vector.broadcast %16 : vector<8x1xf32> to vector<8x256xf32>
    %20 = arith.addf %18, %19 : vector<8x256xf32>
    %c0_17 = arith.constant 0 : index
    %c0_18 = arith.constant 0 : index
    %21 = vector.load %arg8[%c0_17, %c0_18] : memref<8x256xf32, #tpu.memory_space<vmem>>, vector<8x256xf32>
    tpu.vector_store %arg8[%c0_17, %c0_18], %20 {strides = array<i32>} : memref<8x256xf32, #tpu.memory_space<vmem>>, vector<8x256xf32>,
    return
  }
  func.func @transform_0(%arg0: i32) -> (i32, i32) {
    %c0_i32 = arith.constant 0 : i32
    %c0_i32_0 = arith.constant 0 : i32
    return %arg0, %c0_i32 : i32, i32
  }
  func.func @transform_1(%arg0: i32) -> (i32, i32) {
    %c0_i32 = arith.constant 0 : i32
    %c0_i32_0 = arith.constant 0 : i32
    %c0_i32_1 = arith.constant 0 : i32
    return %c0_i32, %c0_i32_0 : i32, i32
  }
  func.func @transform_2(%arg0: i32) -> (i32, i32) {
    %c0_i32 = arith.constant 0 : i32
    %c0_i32_0 = arith.constant 0 : i32
    %c0_i32_1 = arith.constant 0 : i32
    return %c0_i32, %c0_i32_0 : i32, i32
  }
  func.func @transform_3(%arg0: i32) -> (i32, i32) {
    %c0_i32 = arith.constant 0 : i32
    %c0_i32_0 = arith.constant 0 : i32
    %c0_i32_1 = arith.constant 0 : i32
    return %c0_i32, %c0_i32_0 : i32, i32
  }
  func.func @transform_4(%arg0: i32) -> (i32, i32) {
    %c0_i32 = arith.constant 0 : i32
    %c0_i32_0 = arith.constant 0 : i32
    %c0_i32_1 = arith.constant 0 : i32
    return %c0_i32, %c0_i32_0 : i32, i32
  }
  func.func @transform_5(%arg0: i32) -> (i32, i32) {
    %c0_i32 = arith.constant 0 : i32
    %c0_i32_0 = arith.constant 0 : i32
    %c0_i32_1 = arith.constant 0 : i32
    return %c0_i32, %c0_i32_0 : i32, i32
  }
  func.func @transform_6(%arg0: i32) -> (i32, i32) {
    %c0_i32 = arith.constant 0 : i32
    %c0_i32_0 = arith.constant 0 : i32
    %c0_i32_1 = arith.constant 0 : i32
    return %c0_i32, %c0_i32_0 : i32, i32
  }
  func.func @transform_7(%arg0: i32) -> (i32, i32) {
    %c0_i32 = arith.constant 0 : i32
    %c0_i32_0 = arith.constant 0 : i32
    return %c0_i32, %arg0 : i32, i32
  }
}

</mosaic_0001>

<llo_original>
// kernel: tpu_custom_call.1
$region0: #{tpu_custom_call.1}
  #allocation0 [shape = 'u32[]', space=smem, size = 0x4, offset = 0x4, fixed_abs, tag = 'smem constant byte address 0x4 - core index']
  #allocation1 [shape = 'u32[144,128]{1,0:T(1,128)}', space=vmem, size = 0x12000, scoped, tag = 'internal scratch']
  %s0 = inlined_call_operand.vmem [shape: f32[2048,32], index: 0, kind: input, shape index: {}]
  %s1 = inlined_call_operand.vmem [shape: f32[32,128], index: 1, kind: input, shape index: {}]
  %s2 = inlined_call_operand.vmem [shape: f32[1,128], index: 2, kind: input, shape index: {}]
  %s3 = inlined_call_operand.vmem [shape: f32[128,128], index: 3, kind: input, shape index: {}]
  %s4 = inlined_call_operand.vmem [shape: f32[1,128], index: 4, kind: input, shape index: {}]
  %s5 = inlined_call_operand.vmem [shape: f32[8,128], index: 5, kind: input, shape index: {}]
  %s6 = inlined_call_operand.vmem [shape: f32[8,1], index: 6, kind: input, shape index: {}]
  %s7 = inlined_call_operand.hbm [shape: f32[8,2048], index: 7, kind: output, shape index: {}]
  %s8 = sld [smem:[#allocation0]]
  $region61: #{tpu_custom_call.1} parent=0
    _
  %s10 = ssub.s32 1, %s8
  %s11 = scalar_select 0, %s10, %s8
  $region1: #{tpu_custom_call.1} parent=0
    #allocation2 [shape = 'u8[16384]{0}', space=vmem, size = 0x4000, scoped, tag = 'output window, operand 0']
    #allocation3 [shape = 's32[2]{0}', space=sflag, size = 0x8, scoped, tag = 'scoped memory for tpu_custom_call.1']
    %12 = vsyncpa [#allocation3], 0
    %s13 = scalar_lea.sflag [#allocation3], 1
    %14 = vsyncpa %s13, 0
    loop: start=0, step=1, limit=10
    $region2: #{tpu_custom_call.1} parent=1 // loop_pre_header
      _
    $region3: #{tpu_custom_call.1} parent=1 // loop_header
      %s16 = sphi 0, %s20
      %p17 = scmp.ge.s32.totalorder %s16, 10
      %s26 = sphi 0, %s28
      %s29 = sphi 0, %s26
      %s30 = sphi 0, %s29
      %s46 = sphi 0, %s30
      %s50 = sphi 0, %s50
      %s52 = sphi 0, %s50
      %s53 = sphi 0, %s52
      %s67 = sphi 0, %s53
      %s71 = sphi 0, %s71
      %s73 = sphi 0, %s71
      %s74 = sphi 0, %s73
      %s88 = sphi 0, %s74
      %s92 = sphi 0, %s92
      %s94 = sphi 0, %s92
      %s95 = sphi 0, %s94
      %s109 = sphi 0, %s95
      %s113 = sphi 0, %s113
      %s115 = sphi 0, %s113
      %s116 = sphi 0, %s115
      %s130 = sphi 0, %s116
      %s134 = sphi 0, %s134
      %s136 = sphi 0, %s134
      %s137 = sphi 0, %s136
      %s151 = sphi 0, %s137
      %s155 = sphi 0, %s155
      %s157 = sphi 0, %s155
      %s158 = sphi 0, %s157
      %s172 = sphi 0, %s158
      %s178 = sphi 0, %s180
      %s181 = sphi 0, %s178
      %s182 = sphi 0, %s181
      %s198 = sphi 0, %s182
    $region4: #{tpu_custom_call.1} parent=1 // loop_header_branch
      %19 = sbr.rel (%p17) target = $region8
    $region5: #{tpu_custom_call.1} parent=1 // loop_body
      %s21 = ssub.s32 %s16, 1
      %s22 = ssub.s32 %s16, 2
      %s23 = sadd.s32 %s16, 1
      %s24 = ssub.s32 %s16, %s23
      %p25 = scmp.eq.s32.totalorder %s24, 0
      %s27 = sadd.s32 %s26, 1
      %s28 = scalar_select %p25, %s26, %s27
      %p31 = pneg %p25
      %p32 = scmp.eq.s32.totalorder %s16, 7
      %p33 = por %p31, %p32
      %p34 = scmp.ne.s32.totalorder %s26, %s29
      %p35 = scmp.eq.s32.totalorder %s16, 0
      %p36 = por %p34, %p35
      %p37 = scmp.ne.s32.totalorder %s26, %s29
      %p38 = scmp.eq.s32.totalorder %s21, 7
      %p39 = por %p37, %p38
      %p40 = scmp.ne.s32.totalorder %s29, %s30
      %p41 = scmp.eq.s32.totalorder %s21, 0
      %p42 = por %p40, %p41
      %p43 = scmp.ne.s32.totalorder %s29, %s30
      %p44 = scmp.eq.s32.totalorder %s22, 7
      %p45 = por %p43, %p44
      %p47 = scmp.ne.s32.totalorder %s30, %s46
      %p48 = scmp.eq.s32.totalorder %s22, 0
      %p49 = por %p47, %p48
      %s51 = sadd.s32 %s50, 1
      %p54 = scmp.eq.s32.totalorder %s16, 7
      %p55 = scmp.ne.s32.totalorder %s50, %s52
      %p56 = scmp.eq.s32.totalorder %s16, 0
      %p57 = por %p55, %p56
      %p58 = scmp.ne.s32.totalorder %s50, %s52
      %p59 = scmp.eq.s32.totalorder %s21, 7
      %p60 = por %p58, %p59
      %p61 = scmp.ne.s32.totalorder %s52, %s53
      %p62 = scmp.eq.s32.totalorder %s21, 0
      %p63 = por %p61, %p62
      %p64 = scmp.ne.s32.totalorder %s52, %s53
      %p65 = scmp.eq.s32.totalorder %s22, 7
      %p66 = por %p64, %p65
      %p68 = scmp.ne.s32.totalorder %s53, %s67
      %p69 = scmp.eq.s32.totalorder %s22, 0
      %p70 = por %p68, %p69
      %s72 = sadd.s32 %s71, 1
      %p75 = scmp.eq.s32.totalorder %s16, 7
      %p76 = scmp.ne.s32.totalorder %s71, %s73
      %p77 = scmp.eq.s32.totalorder %s16, 0
      %p78 = por %p76, %p77
      %p79 = scmp.ne.s32.totalorder %s71, %s73
      %p80 = scmp.eq.s32.totalorder %s21, 7
      %p81 = por %p79, %p80
      %p82 = scmp.ne.s32.totalorder %s73, %s74
      %p83 = scmp.eq.s32.totalorder %s21, 0
      %p84 = por %p82, %p83
      %p85 = scmp.ne.s32.totalorder %s73, %s74
      %p86 = scmp.eq.s32.totalorder %s22, 7
      %p87 = por %p85, %p86
      %p89 = scmp.ne.s32.totalorder %s74, %s88
      %p90 = scmp.eq.s32.totalorder %s22, 0
      %p91 = por %p89, %p90
      %s93 = sadd.s32 %s92, 1
      %p96 = scmp.eq.s32.totalorder %s16, 7
      %p97 = scmp.ne.s32.totalorder %s92, %s94
      %p98 = scmp.eq.s32.totalorder %s16, 0
      %p99 = por %p97, %p98
      %p100 = scmp.ne.s32.totalorder %s92, %s94
      %p101 = scmp.eq.s32.totalorder %s21, 7
      %p102 = por %p100, %p101
      %p103 = scmp.ne.s32.totalorder %s94, %s95
      %p104 = scmp.eq.s32.totalorder %s21, 0
      %p105 = por %p103, %p104
      %p106 = scmp.ne.s32.totalorder %s94, %s95
      %p107 = scmp.eq.s32.totalorder %s22, 7
      %p108 = por %p106, %p107
      %p110 = scmp.ne.s32.totalorder %s95, %s109
      %p111 = scmp.eq.s32.totalorder %s22, 0
      %p112 = por %p110, %p111
      %s114 = sadd.s32 %s113, 1
      %p117 = scmp.eq.s32.totalorder %s16, 7
      %p118 = scmp.ne.s32.totalorder %s113, %s115
      %p119 = scmp.eq.s32.totalorder %s16, 0
      %p120 = por %p118, %p119
      %p121 = scmp.ne.s32.totalorder %s113, %s115
      %p122 = scmp.eq.s32.totalorder %s21, 7
      %p123 = por %p121, %p122
      %p124 = scmp.ne.s32.totalorder %s115, %s116
      %p125 = scmp.eq.s32.totalorder %s21, 0
      %p126 = por %p124, %p125
      %p127 = scmp.ne.s32.totalorder %s115, %s116
      %p128 = scmp.eq.s32.totalorder %s22, 7
      %p129 = por %p127, %p128
      %p131 = scmp.ne.s32.totalorder %s116, %s130
      %p132 = scmp.eq.s32.totalorder %s22, 0
      %p133 = por %p131, %p132
      %s135 = sadd.s32 %s134, 1
      %p138 = scmp.eq.s32.totalorder %s16, 7
      %p139 = scmp.ne.s32.totalorder %s134, %s136
      %p140 = scmp.eq.s32.totalorder %s16, 0
      %p141 = por %p139, %p140
      %p142 = scmp.ne.s32.totalorder %s134, %s136
      %p143 = scmp.eq.s32.totalorder %s21, 7
      %p144 = por %p142, %p143
      %p145 = scmp.ne.s32.totalorder %s136, %s137
      %p146 = scmp.eq.s32.totalorder %s21, 0
      %p147 = por %p145, %p146
      %p148 = scmp.ne.s32.totalorder %s136, %s137
      %p149 = scmp.eq.s32.totalorder %s22, 7
      %p150 = por %p148, %p149
      %p152 = scmp.ne.s32.totalorder %s137, %s151
      %p153 = scmp.eq.s32.totalorder %s22, 0
      %p154 = por %p152, %p153
      %s156 = sadd.s32 %s155, 1
      %p159 = scmp.eq.s32.totalorder %s16, 7
      %p160 = scmp.ne.s32.totalorder %s155, %s157
      %p161 = scmp.eq.s32.totalorder %s16, 0
      %p162 = por %p160, %p161
      %p163 = scmp.ne.s32.totalorder %s155, %s157
      %p164 = scmp.eq.s32.totalorder %s21, 7
      %p165 = por %p163, %p164
      %p166 = scmp.ne.s32.totalorder %s157, %s158
      %p167 = scmp.eq.s32.totalorder %s21, 0
      %p168 = por %p166, %p167
      %p169 = scmp.ne.s32.totalorder %s157, %s158
      %p170 = scmp.eq.s32.totalorder %s22, 7
      %p171 = por %p169, %p170
      %p173 = scmp.ne.s32.totalorder %s158, %s172
      %p174 = scmp.eq.s32.totalorder %s22, 0
      %p175 = por %p173, %p174
      %s176 = ssub.s32 %s16, %s23
      %p177 = scmp.eq.s32.totalorder %s176, 0
      %s179 = sadd.s32 %s178, 1
      %s180 = scalar_select %p177, %s178, %s179
      %p183 = pneg %p177
      %p184 = scmp.eq.s32.totalorder %s16, 7
      %p185 = por %p183, %p184
      %p186 = scmp.ne.s32.totalorder %s178, %s181
      %p187 = scmp.eq.s32.totalorder %s16, 0
      %p188 = por %p186, %p187
      %p189 = scmp.ne.s32.totalorder %s178, %s181
      %p190 = scmp.eq.s32.totalorder %s21, 7
      %p191 = por %p189, %p190
      %p192 = scmp.ne.s32.totalorder %s181, %s182
      %p193 = scmp.eq.s32.totalorder %s21, 0
      %p194 = por %p192, %p193
      %p195 = scmp.ne.s32.totalorder %s181, %s182
      %p196 = scmp.eq.s32.totalorder %s22, 7
      %p197 = por %p195, %p196
      %p199 = scmp.ne.s32.totalorder %s182, %s198
      %p200 = scmp.eq.s32.totalorder %s22, 0
      %p201 = por %p199, %p200
      %p202 = scmp.le.s32.totalorder 1, %s16
      %p203 = scmp.lt.s32.totalorder %s16, 9
      %p204 = pnand %p202, %p203
      %p205 = pneg %p204
      // Predicated region
      $region9: #{tpu_custom_call.1} parent=5 // pred_check
        _
      $region10: #{tpu_custom_call.1} parent=5 // pred_check_branch
        %207 = sbr.rel (%p204) target = $region12
      $region11: #{tpu_custom_call.1} parent=5 // pred_region
        %s208 = ssub.s32 %s16, 1
        // Predicated region
        $region13: #{tpu_custom_call.1} parent=11 // pred_check
          %p209 = pneg %p63
        $region14: #{tpu_custom_call.1} parent=11 // pred_check_branch
          %211 = sbr.rel (%p209) target = $region16
        $region15: #{tpu_custom_call.1} parent=11 // pred_region
          _
        $region16: #{tpu_custom_call.1} parent=11 // pred_fallthru
          _
        // Predicated region
        $region17: #{tpu_custom_call.1} parent=11 // pred_check
          %p212 = pneg %p84
        $region18: #{tpu_custom_call.1} parent=11 // pred_check_branch
          %214 = sbr.rel (%p212) target = $region20
        $region19: #{tpu_custom_call.1} parent=11 // pred_region
          _
        $region20: #{tpu_custom_call.1} parent=11 // pred_fallthru
          _
        // Predicated region
        $region21: #{tpu_custom_call.1} parent=11 // pred_check
          %p215 = pneg %p105
        $region22: #{tpu_custom_call.1} parent=11 // pred_check_branch
          %217 = sbr.rel (%p215) target = $region24
        $region23: #{tpu_custom_call.1} parent=11 // pred_region
          _
        $region24: #{tpu_custom_call.1} parent=11 // pred_fallthru
          _
        // Predicated region
        $region25: #{tpu_custom_call.1} parent=11 // pred_check
          %p218 = pneg %p126
        $region26: #{tpu_custom_call.1} parent=11 // pred_check_branch
          %220 = sbr.rel (%p218) target = $region28
        $region27: #{tpu_custom_call.1} parent=11 // pred_region
          _
        $region28: #{tpu_custom_call.1} parent=11 // pred_fallthru
          _
        // Predicated region
        $region29: #{tpu_custom_call.1} parent=11 // pred_check
          %p221 = pneg %p147
        $region30: #{tpu_custom_call.1} parent=11 // pred_check_branch
          %223 = sbr.rel (%p221) target = $region32
        $region31: #{tpu_custom_call.1} parent=11 // pred_region
          _
        $region32: #{tpu_custom_call.1} parent=11 // pred_fallthru
          _
        // Predicated region
        $region33: #{tpu_custom_call.1} parent=11 // pred_check
          %p224 = pneg %p168
        $region34: #{tpu_custom_call.1} parent=11 // pred_check_branch
          %226 = sbr.rel (%p224) target = $region36
        $region35: #{tpu_custom_call.1} parent=11 // pred_region
          _
        $region36: #{tpu_custom_call.1} parent=11 // pred_fallthru
          _
      $region12: #{tpu_custom_call.1} parent=5 // pred_fallthru
        _
      %p227 = scmp.lt.s32.totalorder %s16, 8
      // Predicated region
      $region37: #{tpu_custom_call.1} parent=5 // pred_check
        %p228 = pneg %p227
      $region38: #{tpu_custom_call.1} parent=5 // pred_check_branch
        %230 = sbr.rel (%p228) target = $region40
      $region39: #{tpu_custom_call.1} parent=5 // pred_region
        // Predicated region
        $region41: #{tpu_custom_call.1} parent=39 // pred_check
          %p231 = pneg %p36
        $region42: #{tpu_custom_call.1} parent=39 // pred_check_branch
          %233 = sbr.rel (%p231) target = $region44
        $region43: #{tpu_custom_call.1} parent=39 // pred_region
          %s234 = smul.u32 32, %s16
          %p235 = scmp.lt.s32.totalorder %s234, 255
          %s236 = scalar_select %p235, %s234, 255
          %s237 = smul.addr %s236, 8
          %s238 = scalar_lea.vmem %s0, %s237
          %s239 = smul.u32 32, %s16
        $region44: #{tpu_custom_call.1} parent=39 // pred_fallthru
          _
      $region40: #{tpu_custom_call.1} parent=5 // pred_fallthru
        _
      %p240 = scmp.le.s32.totalorder 1, %s16
      %p241 = scmp.lt.s32.totalorder %s16, 9
      %p242 = pnand %p240, %p241
      %p243 = pneg %p242
      // Predicated region
      $region45: #{tpu_custom_call.1} parent=5 // pred_check
        _
      $region46: #{tpu_custom_call.1} parent=5 // pred_check_branch
        %245 = sbr.rel (%p242) target = $region48
      $region47: #{tpu_custom_call.1} parent=5 // pred_region
        %s246 = ssub.s32 %s16, 1
        %s247 = smul.u32 32, %s21
        %p248 = scmp.lt.s32.totalorder %s247, 255
        %s249 = scalar_select %p248, %s247, 255
        %s250 = smul.addr %s249, 8
        %s251 = scalar_lea.vmem %s0, %s250
        %p252 = pneg %p42
        %p253 = pneg %p39
        %p254 = pneg %p63
        %p255 = pneg %p60
        %p256 = pneg %p84
        %p257 = pneg %p81
        %p258 = pneg %p105
        %p259 = pneg %p102
        %p260 = pneg %p126
        %p261 = pneg %p123
        %p262 = pneg %p147
        %p263 = pneg %p144
        %p264 = pneg %p168
        %p265 = pneg %p165
        %p266 = pneg %p194
        %p267 = pneg %p191
        %s268 = sand.u32 %s181, 1
        %s269 = scalar_lea.sflag [#allocation3], %s268
        %s270 = sand.u32 %s181, 1
        %s271 = smul.addr %s270, 16
        %s272 = scalar_lea.vmem [#allocation2], %s271
        %s273 = smul.u32 32, %s21
        %p274 = scmp.lt.s32.totalorder %s273, 255
        %s275 = scalar_select %p274, %s273, 255
        %s276 = smul.addr %s275, 8
        %s277 = scalar_lea.vmem %s0, %s276
        %s278 = smul.u32 32, %s21
        %s279 = smul.u32 2, %s21
        %v280 = vld [vmem:[%s277] sm:$0xff]
        %v281 = vld [vmem:[%s277 + $0x8] sm:$0xff]
        %v282 = vld [vmem:[%s277 + $0x10] sm:$0xff]
        %v283 = vld [vmem:[%s277 + $0x18] sm:$0xff]
        %v284 = vld [vmem:[%s277 + $0x20] sm:$0xff]
        %v285 = vld [vmem:[%s277 + $0x28] sm:$0xff]
        %v286 = vld [vmem:[%s277 + $0x30] sm:$0xff]
        %v287 = vld [vmem:[%s277 + $0x38] sm:$0xff]
        %v288 = vld [vmem:[%s277 + $0x40] sm:$0xff]
        %v289 = vld [vmem:[%s277 + $0x48] sm:$0xff]
        %v290 = vld [vmem:[%s277 + $0x50] sm:$0xff]
        %v291 = vld [vmem:[%s277 + $0x58] sm:$0xff]
        %v292 = vld [vmem:[%s277 + $0x60] sm:$0xff]
        %v293 = vld [vmem:[%s277 + $0x68] sm:$0xff]
        %v294 = vld [vmem:[%s277 + $0x70] sm:$0xff]
        %v295 = vld [vmem:[%s277 + $0x78] sm:$0xff]
        %v296 = vld [vmem:[%s277 + $0x80] sm:$0xff]
        %v297 = vld [vmem:[%s277 + $0x88] sm:$0xff]
        %v298 = vld [vmem:[%s277 + $0x90] sm:$0xff]
        %v299 = vld [vmem:[%s277 + $0x98] sm:$0xff]
        %v300 = vld [vmem:[%s277 + $0xa0] sm:$0xff]
        %v301 = vld [vmem:[%s277 + $0xa8] sm:$0xff]
        %v302 = vld [vmem:[%s277 + $0xb0] sm:$0xff]
        %v303 = vld [vmem:[%s277 + $0xb8] sm:$0xff]
        %v304 = vld [vmem:[%s277 + $0xc0] sm:$0xff]
        %v305 = vld [vmem:[%s277 + $0xc8] sm:$0xff]
        %v306 = vld [vmem:[%s277 + $0xd0] sm:$0xff]
        %v307 = vld [vmem:[%s277 + $0xd8] sm:$0xff]
        %v308 = vld [vmem:[%s277 + $0xe0] sm:$0xff]
        %v309 = vld [vmem:[%s277 + $0xe8] sm:$0xff]
        %v310 = vld [vmem:[%s277 + $0xf0] sm:$0xff]
        %v311 = vld [vmem:[%s277 + $0xf8] sm:$0xff]
        %v312 = vld [vmem:[%s1] sm:$0xff]
        %v313 = vld [vmem:[%s1 + $0x8] sm:$0xff]
        %v314 = vld [vmem:[%s1 + $0x10] sm:$0xff]
        %v315 = vld [vmem:[%s1 + $0x18] sm:$0xff]
        %v316 = vld [vmem:[%s2] sm:$0x1]
        %v318 = vlaneseq
        %v319 = vshrl.u32 %v318, 7
        %v320 = vsub.s32 0, %v319
        %v321 = vrot.slane %v316, %v320
        %vm323 = vcmask 261120
        %v325 = vsel %vm323, %v280, 0
        %v328 = vsel %vm323, %v281, 0
        %v331 = vsel %vm323, %v282, 0
        %v334 = vsel %vm323, %v283, 0
        %v337 = vsel %vm323, %v284, 0
        %v340 = vsel %vm323, %v285, 0
        %v343 = vsel %vm323, %v286, 0
        %v346 = vsel %vm323, %v287, 0
        %v349 = vsel %vm323, %v288, 0
        %v352 = vsel %vm323, %v289, 0
        %v355 = vsel %vm323, %v290, 0
        %v358 = vsel %vm323, %v291, 0
        %v361 = vsel %vm323, %v292, 0
        %v364 = vsel %vm323, %v293, 0
        %v367 = vsel %vm323, %v294, 0
        %v370 = vsel %vm323, %v295, 0
        %v373 = vsel %vm323, %v296, 0
        %v376 = vsel %vm323, %v297, 0
        %v379 = vsel %vm323, %v298, 0
        %v382 = vsel %vm323, %v299, 0
        %v385 = vsel %vm323, %v300, 0
        %v388 = vsel %vm323, %v301, 0
        %v391 = vsel %vm323, %v302, 0
        %v394 = vsel %vm323, %v303, 0
        %v397 = vsel %vm323, %v304, 0
        %v400 = vsel %vm323, %v305, 0
        %v403 = vsel %vm323, %v306, 0
        %v406 = vsel %vm323, %v307, 0
        %v409 = vsel %vm323, %v308, 0
        %v412 = vsel %vm323, %v309, 0
        %v415 = vsel %vm323, %v310, 0
        %v418 = vsel %vm323, %v311, 0
        %420 = vmatprep.subr.mxu0 0.0
        %421 = vmatpush1.msra.mxu0 %v312
        %422 = vmatprep.subr.mxu0 0.0
        %423 = vmatpush1.msra.mxu0 %v313
        %424 = vmatprep.subr.mxu0 0.0
        %425 = vmatpush1.msra.mxu0 %v314
        %426 = vmatprep.subr.mxu0 0.0
        %427 = vmatpush1.msra.mxu0 %v315
        %428 = vmatprep.subr.mxu0 0.0
        %429 = vmatpush1.msra.mxu0 0.0
        %430 = vmatprep.subr.mxu0 0.0
        %431 = vmatpush1.msra.mxu0 0.0
        %432 = vmatprep.subr.mxu0 0.0
        %433 = vmatpush1.msra.mxu0 0.0
        %434 = vmatprep.subr.mxu0 0.0
        %435 = vmatpush1.msra.mxu0 0.0
        %436 = vmatprep.subr.mxu0 0.0
        %437 = vmatpush1.msra.mxu0 0.0
        %438 = vmatprep.subr.mxu0 0.0
        %439 = vmatpush1.msra.mxu0 0.0
        %440 = vmatprep.subr.mxu0 0.0
        %441 = vmatpush1.msra.mxu0 0.0
        %442 = vmatprep.subr.mxu0 0.0
        %443 = vmatpush1.msra.mxu0 0.0
        %444 = vmatprep.subr.mxu0 0.0
        %445 = vmatpush1.msra.mxu0 0.0
        %446 = vmatprep.subr.mxu0 0.0
        %447 = vmatpush1.msra.mxu0 0.0
        %448 = vmatprep.subr.mxu0 0.0
        %449 = vmatpush1.msra.mxu0 0.0
        %450 = vmatprep.subr.mxu0 0.0
        %451 = vmatpush1.msra.mxu0 0.0
        %452 = vmatprep.subr.mxu0 0.0
        %453 = vmatpush1.msra.mxu0 0.0
        %454 = vmatprep.subr.mxu0 0.0
        %455 = vmatpush1.msra.mxu0 0.0
        %456 = vmatprep.subr.mxu0 0.0
        %457 = vmatpush1.msra.mxu0 0.0
        %458 = vmatprep.subr.mxu0 0.0
        %459 = vmatpush1.msra.mxu0 0.0
        %460 = vmatprep.subr.mxu0 0.0
        %461 = vmatpush1.msra.mxu0 0.0
        %462 = vmatprep.subr.mxu0 0.0
        %463 = vmatpush1.msra.mxu0 0.0
        %464 = vmatprep.subr.mxu0 0.0
        %465 = vmatpush1.msra.mxu0 0.0
        %466 = vmatprep.subr.mxu0 0.0
        %467 = vmatpush1.msra.mxu0 0.0
        %468 = vmatprep.subr.mxu0 0.0
        %469 = vmatpush1.msra.mxu0 0.0
        %470 = vmatprep.subr.mxu0 0.0
        %471 = vmatpush1.msra.mxu0 0.0
        %472 = vmatprep.subr.mxu0 0.0
        %473 = vmatpush1.msra.mxu0 0.0
        %474 = vmatprep.subr.mxu0 0.0
        %475 = vmatpush1.msra.mxu0 0.0
        %476 = vmatprep.subr.mxu0 0.0
        %477 = vmatpush1.msra.mxu0 0.0
        %478 = vmatprep.subr.mxu0 0.0
        %479 = vmatpush1.msra.mxu0 0.0
        %480 = vmatprep.subr.mxu0 0.0
        %481 = vmatpush1.msra.mxu0 0.0
        %482 = vmatprep.subr.mxu0 0.0
        %483 = vmatpush1.msra.mxu0 0.0
        %484 = vmatprep.mubr.f32.mxu0 0.0
        %485 = vmatmul.mubr.f32.gmra.mrb[0].mxu0 %v325
        %v486 = vpop.f32.mrb[0].mxu0
        %v487 = vadd.f32 %v321, %v486
        %v488 = vpop.f32.mrb[0].mxu0
        %489 = vmatprep.mubr.f32.mxu0 0.0
        %490 = vmatmul.mubr.f32.gmra.mrb[0].mxu0 %v328
        %v491 = vpop.f32.mrb[0].mxu0
        %v492 = vadd.f32 %v321, %v491
        %v493 = vpop.f32.mrb[0].mxu0
        %494 = vmatprep.mubr.f32.mxu0 0.0
        %495 = vmatmul.mubr.f32.gmra.mrb[0].mxu0 %v331
        %v496 = vpop.f32.mrb[0].mxu0
        %v497 = vadd.f32 %v321, %v496
        %v498 = vpop.f32.mrb[0].mxu0
        %499 = vmatprep.mubr.f32.mxu0 0.0
        %500 = vmatmul.mubr.f32.gmra.mrb[0].mxu0 %v334
        %v501 = vpop.f32.mrb[0].mxu0
        %v502 = vadd.f32 %v321, %v501
        %v503 = vpop.f32.mrb[0].mxu0
        %504 = vmatprep.mubr.f32.mxu0 0.0
        %505 = vmatmul.mubr.f32.gmra.mrb[0].mxu0 %v337
        %v506 = vpop.f32.mrb[0].mxu0
        %v507 = vadd.f32 %v321, %v506
        %v508 = vpop.f32.mrb[0].mxu0
        %509 = vmatprep.mubr.f32.mxu0 0.0
        %510 = vmatmul.mubr.f32.gmra.mrb[0].mxu0 %v340
        %v511 = vpop.f32.mrb[0].mxu0
        %v512 = vadd.f32 %v321, %v511
        %v513 = vpop.f32.mrb[0].mxu0
        %514 = vmatprep.mubr.f32.mxu0 0.0
        %515 = vmatmul.mubr.f32.gmra.mrb[0].mxu0 %v343
        %v516 = vpop.f32.mrb[0].mxu0
        %v517 = vadd.f32 %v321, %v516
        %v518 = vpop.f32.mrb[0].mxu0
        %519 = vmatprep.mubr.f32.mxu0 0.0
        %520 = vmatmul.mubr.f32.gmra.mrb[0].mxu0 %v346
        %v521 = vpop.f32.mrb[0].mxu0
        %v522 = vadd.f32 %v321, %v521
        %v523 = vpop.f32.mrb[0].mxu0
        %524 = vmatprep.mubr.f32.mxu0 0.0
        %525 = vmatmul.mubr.f32.gmra.mrb[0].mxu0 %v349
        %v526 = vpop.f32.mrb[0].mxu0
        %v527 = vadd.f32 %v321, %v526
        %v528 = vpop.f32.mrb[0].mxu0
        %529 = vmatprep.mubr.f32.mxu0 0.0
        %530 = vmatmul.mubr.f32.gmra.mrb[0].mxu0 %v352
        %v531 = vpop.f32.mrb[0].mxu0
        %v532 = vadd.f32 %v321, %v531
        %v533 = vpop.f32.mrb[0].mxu0
        %534 = vmatprep.mubr.f32.mxu0 0.0
        %535 = vmatmul.mubr.f32.gmra.mrb[0].mxu0 %v355
        %v536 = vpop.f32.mrb[0].mxu0
        %v537 = vadd.f32 %v321, %v536
        %v538 = vpop.f32.mrb[0].mxu0
        %539 = vmatprep.mubr.f32.mxu0 0.0
        %540 = vmatmul.mubr.f32.gmra.mrb[0].mxu0 %v358
        %v541 = vpop.f32.mrb[0].mxu0
        %v542 = vadd.f32 %v321, %v541
        %v543 = vpop.f32.mrb[0].mxu0
        %544 = vmatprep.mubr.f32.mxu0 0.0
        %545 = vmatmul.mubr.f32.gmra.mrb[0].mxu0 %v361
        %v546 = vpop.f32.mrb[0].mxu0
        %v547 = vadd.f32 %v321, %v546
        %v548 = vpop.f32.mrb[0].mxu0
        %549 = vmatprep.mubr.f32.mxu0 0.0
        %550 = vmatmul.mubr.f32.gmra.mrb[0].mxu0 %v364
        %v551 = vpop.f32.mrb[0].mxu0
        %v552 = vadd.f32 %v321, %v551
        %v553 = vpop.f32.mrb[0].mxu0
        %554 = vmatprep.mubr.f32.mxu0 0.0
        %555 = vmatmul.mubr.f32.gmra.mrb[0].mxu0 %v367
        %v556 = vpop.f32.mrb[0].mxu0
        %v557 = vadd.f32 %v321, %v556
        %v558 = vpop.f32.mrb[0].mxu0
        %559 = vmatprep.mubr.f32.mxu0 0.0
        %560 = vmatmul.mubr.f32.gmra.mrb[0].mxu0 %v370
        %v561 = vpop.f32.mrb[0].mxu0
        %v562 = vadd.f32 %v321, %v561
        %v563 = vpop.f32.mrb[0].mxu0
        %564 = vmatprep.mubr.f32.mxu0 0.0
        %565 = vmatmul.mubr.f32.gmra.mrb[0].mxu0 %v373
        %v566 = vpop.f32.mrb[0].mxu0
        %v567 = vadd.f32 %v321, %v566
        %v568 = vpop.f32.mrb[0].mxu0
        %569 = vmatprep.mubr.f32.mxu0 0.0
        %570 = vmatmul.mubr.f32.gmra.mrb[0].mxu0 %v376
        %v571 = vpop.f32.mrb[0].mxu0
        %v572 = vadd.f32 %v321, %v571
        %v573 = vpop.f32.mrb[0].mxu0
        %574 = vmatprep.mubr.f32.mxu0 0.0
        %575 = vmatmul.mubr.f32.gmra.mrb[0].mxu0 %v379
        %v576 = vpop.f32.mrb[0].mxu0
        %v577 = vadd.f32 %v321, %v576
        %v578 = vpop.f32.mrb[0].mxu0
        %579 = vmatprep.mubr.f32.mxu0 0.0
        %580 = vmatmul.mubr.f32.gmra.mrb[0].mxu0 %v382
        %v581 = vpop.f32.mrb[0].mxu0
        %v582 = vadd.f32 %v321, %v581
        %v583 = vpop.f32.mrb[0].mxu0
        %584 = vmatprep.mubr.f32.mxu0 0.0
        %585 = vmatmul.mubr.f32.gmra.mrb[0].mxu0 %v385
        %v586 = vpop.f32.mrb[0].mxu0
        %v587 = vadd.f32 %v321, %v586
        %v588 = vpop.f32.mrb[0].mxu0
        %589 = vmatprep.mubr.f32.mxu0 0.0
        %590 = vmatmul.mubr.f32.gmra.mrb[0].mxu0 %v388
        %v591 = vpop.f32.mrb[0].mxu0
        %v592 = vadd.f32 %v321, %v591
        %v593 = vpop.f32.mrb[0].mxu0
        %594 = vmatprep.mubr.f32.mxu0 0.0
        %595 = vmatmul.mubr.f32.gmra.mrb[0].mxu0 %v391
        %v596 = vpop.f32.mrb[0].mxu0
        %v597 = vadd.f32 %v321, %v596
        %v598 = vpop.f32.mrb[0].mxu0
        %599 = vmatprep.mubr.f32.mxu0 0.0
        %600 = vmatmul.mubr.f32.gmra.mrb[0].mxu0 %v394
        %v601 = vpop.f32.mrb[0].mxu0
        %v602 = vadd.f32 %v321, %v601
        %v603 = vpop.f32.mrb[0].mxu0
        %604 = vmatprep.mubr.f32.mxu0 0.0
        %605 = vmatmul.mubr.f32.gmra.mrb[0].mxu0 %v397
        %v606 = vpop.f32.mrb[0].mxu0
        %v607 = vadd.f32 %v321, %v606
        %v608 = vpop.f32.mrb[0].mxu0
        %609 = vmatprep.mubr.f32.mxu0 0.0
        %610 = vmatmul.mubr.f32.gmra.mrb[0].mxu0 %v400
        %v611 = vpop.f32.mrb[0].mxu0
        %v612 = vadd.f32 %v321, %v611
        %v613 = vpop.f32.mrb[0].mxu0
        %614 = vmatprep.mubr.f32.mxu0 0.0
        %615 = vmatmul.mubr.f32.gmra.mrb[0].mxu0 %v403
        %v616 = vpop.f32.mrb[0].mxu0
        %v617 = vadd.f32 %v321, %v616
        %v618 = vpop.f32.mrb[0].mxu0
        %619 = vmatprep.mubr.f32.mxu0 0.0
        %620 = vmatmul.mubr.f32.gmra.mrb[0].mxu0 %v406
        %v621 = vpop.f32.mrb[0].mxu0
        %v622 = vadd.f32 %v321, %v621
        %v623 = vpop.f32.mrb[0].mxu0
        %624 = vmatprep.mubr.f32.mxu0 0.0
        %625 = vmatmul.mubr.f32.gmra.mrb[0].mxu0 %v409
        %v626 = vpop.f32.mrb[0].mxu0
        %v627 = vadd.f32 %v321, %v626
        %v628 = vpop.f32.mrb[0].mxu0
        %629 = vmatprep.mubr.f32.mxu0 0.0
        %630 = vmatmul.mubr.f32.gmra.mrb[0].mxu0 %v412
        %v631 = vpop.f32.mrb[0].mxu0
        %v632 = vadd.f32 %v321, %v631
        %v633 = vpop.f32.mrb[0].mxu0
        %634 = vmatprep.mubr.f32.mxu0 0.0
        %635 = vmatmul.mubr.f32.gmra.mrb[0].mxu0 %v415
        %v636 = vpop.f32.mrb[0].mxu0
        %v637 = vadd.f32 %v321, %v636
        %v638 = vpop.f32.mrb[0].mxu0
        %639 = vmatprep.mubr.f32.mxu0 0.0
        %640 = vmatmul.mubr.f32.gmra.mrb[0].mxu0 %v418
        %v641 = vpop.f32.mrb[0].mxu0
        %v642 = vadd.f32 %v321, %v641
        %v643 = vpop.f32.mrb[0].mxu0
        %644 = vdwg.mxu0
        %v645 = vmax.f32 %v487, 0.0
        %v646 = vmax.f32 %v492, 0.0
        %v647 = vmax.f32 %v497, 0.0
        %v648 = vmax.f32 %v502, 0.0
        %v649 = vmax.f32 %v507, 0.0
        %v650 = vmax.f32 %v512, 0.0
        %v651 = vmax.f32 %v517, 0.0
        %v652 = vmax.f32 %v522, 0.0
        %v653 = vmax.f32 %v527, 0.0
        %v654 = vmax.f32 %v532, 0.0
        %v655 = vmax.f32 %v537, 0.0
        %v656 = vmax.f32 %v542, 0.0
        %v657 = vmax.f32 %v547, 0.0
        %v658 = vmax.f32 %v552, 0.0
        %v659 = vmax.f32 %v557, 0.0
        %v660 = vmax.f32 %v562, 0.0
        %v661 = vmax.f32 %v567, 0.0
        %v662 = vmax.f32 %v572, 0.0
        %v663 = vmax.f32 %v577, 0.0
        %v664 = vmax.f32 %v582, 0.0
        %v665 = vmax.f32 %v587, 0.0
        %v666 = vmax.f32 %v592, 0.0
        %v667 = vmax.f32 %v597, 0.0
        %v668 = vmax.f32 %v602, 0.0
        %v669 = vmax.f32 %v607, 0.0
        %v670 = vmax.f32 %v612, 0.0
        %v671 = vmax.f32 %v617, 0.0
        %v672 = vmax.f32 %v622, 0.0
        %v673 = vmax.f32 %v627, 0.0
        %v674 = vmax.f32 %v632, 0.0
        %v675 = vmax.f32 %v637, 0.0
        %v676 = vmax.f32 %v642, 0.0
        %v677 = vld [vmem:[%s3] sm:$0xff]
        %v678 = vld [vmem:[%s3 + $0x8] sm:$0xff]
        %v679 = vld [vmem:[%s3 + $0x10] sm:$0xff]
        %v680 = vld [vmem:[%s3 + $0x18] sm:$0xff]
        %v681 = vld [vmem:[%s3 + $0x20] sm:$0xff]
        %v682 = vld [vmem:[%s3 + $0x28] sm:$0xff]
        %v683 = vld [vmem:[%s3 + $0x30] sm:$0xff]
        %v684 = vld [vmem:[%s3 + $0x38] sm:$0xff]
        %v685 = vld [vmem:[%s3 + $0x40] sm:$0xff]
        %v686 = vld [vmem:[%s3 + $0x48] sm:$0xff]
        %v687 = vld [vmem:[%s3 + $0x50] sm:$0xff]
        %v688 = vld [vmem:[%s3 + $0x58] sm:$0xff]
        %v689 = vld [vmem:[%s3 + $0x60] sm:$0xff]
        %v690 = vld [vmem:[%s3 + $0x68] sm:$0xff]
        %v691 = vld [vmem:[%s3 + $0x70] sm:$0xff]
        %v692 = vld [vmem:[%s3 + $0x78] sm:$0xff]
        %v693 = vld [vmem:[%s4] sm:$0x1]
        %v695 = vlaneseq
        %v696 = vshrl.u32 %v695, 7
        %v697 = vsub.s32 0, %v696
        %v698 = vrot.slane %v693, %v697
        %700 = vmatprep.subr.mxu0 0.0
        %701 = vmatpush1.msra.mxu0 %v677
        %702 = vmatprep.subr.mxu0 0.0
        %703 = vmatpush1.msra.mxu0 %v678
        %704 = vmatprep.subr.mxu0 0.0
        %705 = vmatpush1.msra.mxu0 %v679
        %706 = vmatprep.subr.mxu0 0.0
        %707 = vmatpush1.msra.mxu0 %v680
        %708 = vmatprep.subr.mxu0 0.0
        %709 = vmatpush1.msra.mxu0 %v681
        %710 = vmatprep.subr.mxu0 0.0
        %711 = vmatpush1.msra.mxu0 %v682
        %712 = vmatprep.subr.mxu0 0.0
        %713 = vmatpush1.msra.mxu0 %v683
        %714 = vmatprep.subr.mxu0 0.0
        %715 = vmatpush1.msra.mxu0 %v684
        %716 = vmatprep.subr.mxu0 0.0
        %717 = vmatpush1.msra.mxu0 %v685
        %718 = vmatprep.subr.mxu0 0.0
        %719 = vmatpush1.msra.mxu0 %v686
        %720 = vmatprep.subr.mxu0 0.0
        %721 = vmatpush1.msra.mxu0 %v687
        %722 = vmatprep.subr.mxu0 0.0
        %723 = vmatpush1.msra.mxu0 %v688
        %724 = vmatprep.subr.mxu0 0.0
        %725 = vmatpush1.msra.mxu0 %v689
        %726 = vmatprep.subr.mxu0 0.0
        %727 = vmatpush1.msra.mxu0 %v690
        %728 = vmatprep.subr.mxu0 0.0
        %729 = vmatpush1.msra.mxu0 %v691
        %730 = vmatprep.subr.mxu0 0.0
        %731 = vmatpush1.msra.mxu0 %v692
        %732 = vmatprep.subr.mxu0 0.0
        %733 = vmatpush1.msra.mxu0 0.0
        %734 = vmatprep.subr.mxu0 0.0
        %735 = vmatpush1.msra.mxu0 0.0
        %736 = vmatprep.subr.mxu0 0.0
        %737 = vmatpush1.msra.mxu0 0.0
        %738 = vmatprep.subr.mxu0 0.0
        %739 = vmatpush1.msra.mxu0 0.0
        %740 = vmatprep.subr.mxu0 0.0
        %741 = vmatpush1.msra.mxu0 0.0
        %742 = vmatprep.subr.mxu0 0.0
        %743 = vmatpush1.msra.mxu0 0.0
        %744 = vmatprep.subr.mxu0 0.0
        %745 = vmatpush1.msra.mxu0 0.0
        %746 = vmatprep.subr.mxu0 0.0
        %747 = vmatpush1.msra.mxu0 0.0
        %748 = vmatprep.subr.mxu0 0.0
        %749 = vmatpush1.msra.mxu0 0.0
        %750 = vmatprep.subr.mxu0 0.0
        %751 = vmatpush1.msra.mxu0 0.0
        %752 = vmatprep.subr.mxu0 0.0
        %753 = vmatpush1.msra.mxu0 0.0
        %754 = vmatprep.subr.mxu0 0.0
        %755 = vmatpush1.msra.mxu0 0.0
        %756 = vmatprep.subr.mxu0 0.0
        %757 = vmatpush1.msra.mxu0 0.0
        %758 = vmatprep.subr.mxu0 0.0
        %759 = vmatpush1.msra.mxu0 0.0
        %760 = vmatprep.subr.mxu0 0.0
        %761 = vmatpush1.msra.mxu0 0.0
        %762 = vmatprep.subr.mxu0 0.0
        %763 = vmatpush1.msra.mxu0 0.0
        %764 = vmatprep.mubr.f32.mxu0 0.0
        %765 = vmatmul.mubr.f32.gmra.mrb[0].mxu0 %v645
        %v766 = vpop.f32.mrb[0].mxu0
        %v767 = vadd.f32 %v698, %v766
        %v768 = vpop.f32.mrb[0].mxu0
        %769 = vmatprep.mubr.f32.mxu0 0.0
        %770 = vmatmul.mubr.f32.gmra.mrb[0].mxu0 %v646
        %v771 = vpop.f32.mrb[0].mxu0
        %v772 = vadd.f32 %v698, %v771
        %v773 = vpop.f32.mrb[0].mxu0
        %774 = vmatprep.mubr.f32.mxu0 0.0
        %775 = vmatmul.mubr.f32.gmra.mrb[0].mxu0 %v647
        %v776 = vpop.f32.mrb[0].mxu0
        %v777 = vadd.f32 %v698, %v776
        %v778 = vpop.f32.mrb[0].mxu0
        %779 = vmatprep.mubr.f32.mxu0 0.0
        %780 = vmatmul.mubr.f32.gmra.mrb[0].mxu0 %v648
        %v781 = vpop.f32.mrb[0].mxu0
        %v782 = vadd.f32 %v698, %v781
        %v783 = vpop.f32.mrb[0].mxu0
        %784 = vmatprep.mubr.f32.mxu0 0.0
        %785 = vmatmul.mubr.f32.gmra.mrb[0].mxu0 %v649
        %v786 = vpop.f32.mrb[0].mxu0
        %v787 = vadd.f32 %v698, %v786
        %v788 = vpop.f32.mrb[0].mxu0
        %789 = vmatprep.mubr.f32.mxu0 0.0
        %790 = vmatmul.mubr.f32.gmra.mrb[0].mxu0 %v650
        %v791 = vpop.f32.mrb[0].mxu0
        %v792 = vadd.f32 %v698, %v791
        %v793 = vpop.f32.mrb[0].mxu0
        %794 = vmatprep.mubr.f32.mxu0 0.0
        %795 = vmatmul.mubr.f32.gmra.mrb[0].mxu0 %v651
        %v796 = vpop.f32.mrb[0].mxu0
        %v797 = vadd.f32 %v698, %v796
        %v798 = vpop.f32.mrb[0].mxu0
        %799 = vmatprep.mubr.f32.mxu0 0.0
        %800 = vmatmul.mubr.f32.gmra.mrb[0].mxu0 %v652
        %v801 = vpop.f32.mrb[0].mxu0
        %v802 = vadd.f32 %v698, %v801
        %v803 = vpop.f32.mrb[0].mxu0
        %804 = vmatprep.mubr.f32.mxu0 0.0
        %805 = vmatmul.mubr.f32.gmra.mrb[0].mxu0 %v653
        %v806 = vpop.f32.mrb[0].mxu0
        %v807 = vadd.f32 %v698, %v806
        %v808 = vpop.f32.mrb[0].mxu0
        %809 = vmatprep.mubr.f32.mxu0 0.0
        %810 = vmatmul.mubr.f32.gmra.mrb[0].mxu0 %v654
        %v811 = vpop.f32.mrb[0].mxu0
        %v812 = vadd.f32 %v698, %v811
        %v813 = vpop.f32.mrb[0].mxu0
        %814 = vmatprep.mubr.f32.mxu0 0.0
        %815 = vmatmul.mubr.f32.gmra.mrb[0].mxu0 %v655
        %v816 = vpop.f32.mrb[0].mxu0
        %v817 = vadd.f32 %v698, %v816
        %v818 = vpop.f32.mrb[0].mxu0
        %819 = vmatprep.mubr.f32.mxu0 0.0
        %820 = vmatmul.mubr.f32.gmra.mrb[0].mxu0 %v656
        %v821 = vpop.f32.mrb[0].mxu0
        %v822 = vadd.f32 %v698, %v821
        %v823 = vpop.f32.mrb[0].mxu0
        %824 = vmatprep.mubr.f32.mxu0 0.0
        %825 = vmatmul.mubr.f32.gmra.mrb[0].mxu0 %v657
        %v826 = vpop.f32.mrb[0].mxu0
        %v827 = vadd.f32 %v698, %v826
        %v828 = vpop.f32.mrb[0].mxu0
        %829 = vmatprep.mubr.f32.mxu0 0.0
        %830 = vmatmul.mubr.f32.gmra.mrb[0].mxu0 %v658
        %v831 = vpop.f32.mrb[0].mxu0
        %v832 = vadd.f32 %v698, %v831
        %v833 = vpop.f32.mrb[0].mxu0
        %834 = vmatprep.mubr.f32.mxu0 0.0
        %835 = vmatmul.mubr.f32.gmra.mrb[0].mxu0 %v659
        %v836 = vpop.f32.mrb[0].mxu0
        %v837 = vadd.f32 %v698, %v836
        %v838 = vpop.f32.mrb[0].mxu0
        %839 = vmatprep.mubr.f32.mxu0 0.0
        %840 = vmatmul.mubr.f32.gmra.mrb[0].mxu0 %v660
        %v841 = vpop.f32.mrb[0].mxu0
        %v842 = vadd.f32 %v698, %v841
        %v843 = vpop.f32.mrb[0].mxu0
        %844 = vmatprep.mubr.f32.mxu0 0.0
        %845 = vmatmul.mubr.f32.gmra.mrb[0].mxu0 %v661
        %v846 = vpop.f32.mrb[0].mxu0
        %v847 = vadd.f32 %v698, %v846
        %v848 = vpop.f32.mrb[0].mxu0
        %849 = vmatprep.mubr.f32.mxu0 0.0
        %850 = vmatmul.mubr.f32.gmra.mrb[0].mxu0 %v662
        %v851 = vpop.f32.mrb[0].mxu0
        %v852 = vadd.f32 %v698, %v851
        %v853 = vpop.f32.mrb[0].mxu0
        %854 = vmatprep.mubr.f32.mxu0 0.0
        %855 = vmatmul.mubr.f32.gmra.mrb[0].mxu0 %v663
        %v856 = vpop.f32.mrb[0].mxu0
        %v857 = vadd.f32 %v698, %v856
        %v858 = vpop.f32.mrb[0].mxu0
        %859 = vmatprep.mubr.f32.mxu0 0.0
        %860 = vmatmul.mubr.f32.gmra.mrb[0].mxu0 %v664
        %v861 = vpop.f32.mrb[0].mxu0
        %v862 = vadd.f32 %v698, %v861
        %v863 = vpop.f32.mrb[0].mxu0
        %864 = vmatprep.mubr.f32.mxu0 0.0
        %865 = vmatmul.mubr.f32.gmra.mrb[0].mxu0 %v665
        %v866 = vpop.f32.mrb[0].mxu0
        %v867 = vadd.f32 %v698, %v866
        %v868 = vpop.f32.mrb[0].mxu0
        %869 = vmatprep.mubr.f32.mxu0 0.0
        %870 = vmatmul.mubr.f32.gmra.mrb[0].mxu0 %v666
        %v871 = vpop.f32.mrb[0].mxu0
        %v872 = vadd.f32 %v698, %v871
        %v873 = vpop.f32.mrb[0].mxu0
        %874 = vmatprep.mubr.f32.mxu0 0.0
        %875 = vmatmul.mubr.f32.gmra.mrb[0].mxu0 %v667
        %v876 = vpop.f32.mrb[0].mxu0
        %v877 = vadd.f32 %v698, %v876
        %v878 = vpop.f32.mrb[0].mxu0
        %879 = vmatprep.mubr.f32.mxu0 0.0
        %880 = vmatmul.mubr.f32.gmra.mrb[0].mxu0 %v668
        %v881 = vpop.f32.mrb[0].mxu0
        %v882 = vadd.f32 %v698, %v881
        %v883 = vpop.f32.mrb[0].mxu0
        %884 = vmatprep.mubr.f32.mxu0 0.0
        %885 = vmatmul.mubr.f32.gmra.mrb[0].mxu0 %v669
        %v886 = vpop.f32.mrb[0].mxu0
        %v887 = vadd.f32 %v698, %v886
        %v888 = vpop.f32.mrb[0].mxu0
        %889 = vmatprep.mubr.f32.mxu0 0.0
        %890 = vmatmul.mubr.f32.gmra.mrb[0].mxu0 %v670
        %v891 = vpop.f32.mrb[0].mxu0
        %v892 = vadd.f32 %v698, %v891
        %v893 = vpop.f32.mrb[0].mxu0
        %894 = vmatprep.mubr.f32.mxu0 0.0
        %895 = vmatmul.mubr.f32.gmra.mrb[0].mxu0 %v671
        %v896 = vpop.f32.mrb[0].mxu0
        %v897 = vadd.f32 %v698, %v896
        %v898 = vpop.f32.mrb[0].mxu0
        %899 = vmatprep.mubr.f32.mxu0 0.0
        %900 = vmatmul.mubr.f32.gmra.mrb[0].mxu0 %v672
        %v901 = vpop.f32.mrb[0].mxu0
        %v902 = vadd.f32 %v698, %v901
        %v903 = vpop.f32.mrb[0].mxu0
        %904 = vmatprep.mubr.f32.mxu0 0.0
        %905 = vmatmul.mubr.f32.gmra.mrb[0].mxu0 %v673
        %v906 = vpop.f32.mrb[0].mxu0
        %v907 = vadd.f32 %v698, %v906
        %v908 = vpop.f32.mrb[0].mxu0
        %909 = vmatprep.mubr.f32.mxu0 0.0
        %910 = vmatmul.mubr.f32.gmra.mrb[0].mxu0 %v674
        %v911 = vpop.f32.mrb[0].mxu0
        %v912 = vadd.f32 %v698, %v911
        %v913 = vpop.f32.mrb[0].mxu0
        %914 = vmatprep.mubr.f32.mxu0 0.0
        %915 = vmatmul.mubr.f32.gmra.mrb[0].mxu0 %v675
        %v916 = vpop.f32.mrb[0].mxu0
        %v917 = vadd.f32 %v698, %v916
        %v918 = vpop.f32.mrb[0].mxu0
        %919 = vmatprep.mubr.f32.mxu0 0.0
        %920 = vmatmul.mubr.f32.gmra.mrb[0].mxu0 %v676
        %v921 = vpop.f32.mrb[0].mxu0
        %v922 = vadd.f32 %v698, %v921
        %v923 = vpop.f32.mrb[0].mxu0
        %924 = vdwg.mxu0
        %v925 = vmax.f32 %v767, 0.0
        %v926 = vmax.f32 %v772, 0.0
        %v927 = vmax.f32 %v777, 0.0
        %v928 = vmax.f32 %v782, 0.0
        %v929 = vmax.f32 %v787, 0.0
        %v930 = vmax.f32 %v792, 0.0
        %v931 = vmax.f32 %v797, 0.0
        %v932 = vmax.f32 %v802, 0.0
        %v933 = vmax.f32 %v807, 0.0
        %v934 = vmax.f32 %v812, 0.0
        %v935 = vmax.f32 %v817, 0.0
        %v936 = vmax.f32 %v822, 0.0
        %v937 = vmax.f32 %v827, 0.0
        %v938 = vmax.f32 %v832, 0.0
        %v939 = vmax.f32 %v837, 0.0
        %v940 = vmax.f32 %v842, 0.0
        %v941 = vmax.f32 %v847, 0.0
        %v942 = vmax.f32 %v852, 0.0
        %v943 = vmax.f32 %v857, 0.0
        %v944 = vmax.f32 %v862, 0.0
        %v945 = vmax.f32 %v867, 0.0
        %v946 = vmax.f32 %v872, 0.0
        %v947 = vmax.f32 %v877, 0.0
        %v948 = vmax.f32 %v882, 0.0
        %v949 = vmax.f32 %v887, 0.0
        %v950 = vmax.f32 %v892, 0.0
        %v951 = vmax.f32 %v897, 0.0
        %v952 = vmax.f32 %v902, 0.0
        %v953 = vmax.f32 %v907, 0.0
        %v954 = vmax.f32 %v912, 0.0
        %v955 = vmax.f32 %v917, 0.0
        %v956 = vmax.f32 %v922, 0.0
        %v957 = vld [vmem:[%s5] sm:$0xff]
        %v958 = vld [vmem:[%s6] sm:$0xff]
        %960 = vset.pattern.permute.xlu0 0
        %961 = vperm.xlu0 %960, %v958
        %v962 = vpop.permute.xlu0 %961
        %964 = vmatprep.subr.mxu0 0.0
        %965 = vmatpush1.xpose.msra.mxu0 %v925
        %966 = vmatprep.subr.mxu0 0.0
        %967 = vmatpush1.xpose.msra.mxu0 %v926
        %968 = vmatprep.subr.mxu0 0.0
        %969 = vmatpush1.xpose.msra.mxu0 %v927
        %970 = vmatprep.subr.mxu0 0.0
        %971 = vmatpush1.xpose.msra.mxu0 %v928
        %972 = vmatprep.subr.mxu0 0.0
        %973 = vmatpush1.xpose.msra.mxu0 %v929
        %974 = vmatprep.subr.mxu0 0.0
        %975 = vmatpush1.xpose.msra.mxu0 %v930
        %976 = vmatprep.subr.mxu0 0.0
        %977 = vmatpush1.xpose.msra.mxu0 %v931
        %978 = vmatprep.subr.mxu0 0.0
        %979 = vmatpush1.xpose.msra.mxu0 %v932
        %980 = vmatprep.subr.mxu0 0.0
        %981 = vmatpush1.xpose.msra.mxu0 %v933
        %982 = vmatprep.subr.mxu0 0.0
        %983 = vmatpush1.xpose.msra.mxu0 %v934
        %984 = vmatprep.subr.mxu0 0.0
        %985 = vmatpush1.xpose.msra.mxu0 %v935
        %986 = vmatprep.subr.mxu0 0.0
        %987 = vmatpush1.xpose.msra.mxu0 %v936
        %988 = vmatprep.subr.mxu0 0.0
        %989 = vmatpush1.xpose.msra.mxu0 %v937
        %990 = vmatprep.subr.mxu0 0.0
        %991 = vmatpush1.xpose.msra.mxu0 %v938
        %992 = vmatprep.subr.mxu0 0.0
        %993 = vmatpush1.xpose.msra.mxu0 %v939
        %994 = vmatprep.subr.mxu0 0.0
        %995 = vmatpush1.xpose.msra.mxu0 %v940
        %996 = vmatprep.subr.mxu0 0.0
        %997 = vmatpush1.xpose.msra.mxu0 %v941
        %998 = vmatprep.subr.mxu0 0.0
        %999 = vmatpush1.xpose.msra.mxu0 %v942
        %1000 = vmatprep.subr.mxu0 0.0
        %1001 = vmatpush1.xpose.msra.mxu0 %v943
        %1002 = vmatprep.subr.mxu0 0.0
        %1003 = vmatpush1.xpose.msra.mxu0 %v944
        %1004 = vmatprep.subr.mxu0 0.0
        %1005 = vmatpush1.xpose.msra.mxu0 %v945
        %1006 = vmatprep.subr.mxu0 0.0
        %1007 = vmatpush1.xpose.msra.mxu0 %v946
        %1008 = vmatprep.subr.mxu0 0.0
        %1009 = vmatpush1.xpose.msra.mxu0 %v947
        %1010 = vmatprep.subr.mxu0 0.0
        %1011 = vmatpush1.xpose.msra.mxu0 %v948
        %1012 = vmatprep.subr.mxu0 0.0
        %1013 = vmatpush1.xpose.msra.mxu0 %v949
        %1014 = vmatprep.subr.mxu0 0.0
        %1015 = vmatpush1.xpose.msra.mxu0 %v950
        %1016 = vmatprep.subr.mxu0 0.0
        %1017 = vmatpush1.xpose.msra.mxu0 %v951
        %1018 = vmatprep.subr.mxu0 0.0
        %1019 = vmatpush1.xpose.msra.mxu0 %v952
        %1020 = vmatprep.subr.mxu0 0.0
        %1021 = vmatpush1.xpose.msra.mxu0 %v953
        %1022 = vmatprep.subr.mxu0 0.0
        %1023 = vmatpush1.xpose.msra.mxu0 %v954
        %1024 = vmatprep.subr.mxu0 0.0
        %1025 = vmatpush1.xpose.msra.mxu0 %v955
        %1026 = vmatprep.subr.mxu0 0.0
        %1027 = vmatpush1.xpose.msra.mxu0 %v956
        %1028 = vmatprep.mubr.f32.mxu0 0.0
        %1029 = vmatmul.mubr.f32.gmra.mrb[0].mxu0 %v957
        %v1030 = vpop.f32.mrb[0].mxu0
        %v1031 = vadd.f32 %v962, %v1030
        %v1032 = vpop.f32.mrb[0].mxu0
        %v1033 = vadd.f32 %v962, %v1032
        %1034 = vdwg.mxu0
        %1035 = vst [vmem:[%s272] sm:$0xff] %v1031
        %1036 = vst [vmem:[%s272 + $0x8] sm:$0xff] %v1033
        %s1037 = sand.u32 %s181, 1
        %s1038 = scalar_lea.sflag [#allocation3], %s1037
        %s1039 = sand.u32 %s181, 1
        %s1040 = smul.addr %s1039, 16
        %s1041 = scalar_lea.vmem [#allocation2], %s1040
        // Predicated region
        $region49: #{tpu_custom_call.1} parent=47 // pred_check
          %p1042 = pneg %p191
        $region50: #{tpu_custom_call.1} parent=47 // pred_check_branch
          %1044 = sbr.rel (%p1042) target = $region52
        $region51: #{tpu_custom_call.1} parent=47 // pred_region
          %s1045 = smul.u32 2, %s21
          %s1047 = ssub.s32 256, 256
          %1048 = vsyncadd %s1038, %s1047
          %s1049 = smul.addr %s1045, 128
          %s1050 = scalar_lea.hbm %s7, %s1049
          %s1052 = sshll.u32 %s1041, 4
          %s1053 = int_to_ptr.vmem [resolvable:$true] %s1052
          %1055 = dma.vmem_to_hbm [thread:$0]  %s1053, 256, %s1050, %s1038
        $region52: #{tpu_custom_call.1} parent=47 // pred_fallthru
          _
      $region48: #{tpu_custom_call.1} parent=5 // pred_fallthru
        _
      %p1056 = scmp.le.s32.totalorder 2, %s16
      // Predicated region
      $region53: #{tpu_custom_call.1} parent=5 // pred_check
        %p1057 = pneg %p1056
      $region54: #{tpu_custom_call.1} parent=5 // pred_check_branch
        %1059 = sbr.rel (%p1057) target = $region56
      $region55: #{tpu_custom_call.1} parent=5 // pred_region
        %s1060 = ssub.s32 %s16, 2
        // Predicated region
        $region57: #{tpu_custom_call.1} parent=55 // pred_check
          %p1061 = pneg %p197
        $region58: #{tpu_custom_call.1} parent=55 // pred_check_branch
          %1063 = sbr.rel (%p1061) target = $region60
        $region59: #{tpu_custom_call.1} parent=55 // pred_region
          %s1064 = sand.u32 %s182, 1
          %s1065 = scalar_lea.sflag [#allocation3], %s1064
          %s1066 = sand.u32 %s182, 1
          %s1067 = smul.addr %s1066, 16
          %s1068 = scalar_lea.vmem [#allocation2], %s1067
          %1069 = dma.done %s1065, 256
        $region60: #{tpu_custom_call.1} parent=55 // pred_fallthru
          _
      $region56: #{tpu_custom_call.1} parent=5 // pred_fallthru
        _
    $region6: #{tpu_custom_call.1} parent=1 // loop_footer
      %s20 = sadd.s32 1, %s16
    $region7: #{tpu_custom_call.1} parent=1 // loop_footer_branch
      %15 = sbr.rel target = $region3
    $region8: #{tpu_custom_call.1} parent=1 // loop_exit
      _
    %1070 = vsyncpa [#allocation3], 1
    %s1071 = scalar_lea.sflag [#allocation3], 1
    %1072 = vsyncpa %s1071, 1

</llo_original>
